<compile_context>
chip_gen: v7x
topology: tpu7x:2x2x1
jax: 0.10.0
libtpu: 0.0.40
codegen_flags: <defaults>
</compile_context>

<pallas_src>
import jax
import jax.numpy as jnp
from jax.experimental import pallas as pl
from jax.experimental.pallas import tpu as pltpu


def _round_up(x, m):
    return ((x + m - 1) // m) * m


def _largest_tile(dim_p, cap):
    """Largest multiple of 128 that divides dim_p (itself a 128-multiple) and is <= cap."""
    t = min(cap, dim_p)
    t -= t % 128
    t = max(t, 128)
    while dim_p % t != 0:
        t -= 128
    return t


# ---------------------------------------------------------------------------
# One-time parameter preparation (amortized across forward calls).
# weight: (N, K) PyTorch layout  ->  (Kp, Np) transposed + padded, lane-dense.
# ---------------------------------------------------------------------------
def prepare_linear_params(weight, bias):
    N, K = weight.shape
    assert bias.shape == (N,)
    Kp = _round_up(K, 128)
    Np = _round_up(N, 128)
    w_t = weight.T                                   # (K, N)
    if (Kp, Np) != (K, N):
        w_t = jnp.pad(w_t, ((0, Kp - K), (0, Np - N)))
    b = bias if Np == N else jnp.pad(bias, (0, Np - N))
    return w_t, b.reshape(1, Np), N, K


# ---------------------------------------------------------------------------
# Single-block kernel: whole (padded) operands live in VMEM, one invocation.
# x: (Bp, Kp), w: (Kp, Np), b: (1, Np), o: (Bp, Np)
# ---------------------------------------------------------------------------
def _linear_kernel_single(x_ref, w_ref, b_ref, o_ref):
    acc = jnp.dot(x_ref[...], w_ref[...], preferred_element_type=jnp.float32)
    o_ref[...] = (acc + b_ref[...]).astype(o_ref.dtype)


# ---------------------------------------------------------------------------
# Tiled kernels: grid = (M tiles, N tiles, K tiles), K innermost.
# f32-output variant accumulates directly into the resident output block
# (bias written as the k==0 initializer); narrow-output variant keeps an f32
# scratch accumulator and casts in the K epilogue.
# ---------------------------------------------------------------------------
def _linear_kernel_tiled_f32(x_ref, w_ref, b_ref, o_ref):
    k = pl.program_id(2)

    @pl.when(k == 0)
    def _init():
        o_ref[...] = jnp.broadcast_to(b_ref[...], o_ref.shape).astype(o_ref.dtype)

    o_ref[...] += jnp.dot(x_ref[...], w_ref[...],
                          preferred_element_type=jnp.float32)


def _linear_kernel_tiled_acc(x_ref, w_ref, b_ref, o_ref, acc_ref):
    k = pl.program_id(2)

    @pl.when(k == 0)
    def _init():
        acc_ref[...] = jnp.zeros_like(acc_ref)

    acc_ref[...] += jnp.dot(x_ref[...], w_ref[...],
                            preferred_element_type=jnp.float32)

    @pl.when(k == pl.num_programs(2) - 1)
    def _finalize():
        o_ref[...] = (acc_ref[...] + b_ref[...]).astype(o_ref.dtype)


# Keep the per-call working set comfortably under every generation's scoped
# VMEM default (v5e: 16 MiB, v6e/v7x: 32 MiB; v7x has only 64 MiB physical).
_VMEM_TILE_BUDGET = 12 * 1024 * 1024


def _tiled_footprint(tm, tn, tk, in_it, out_it, needs_scratch):
    b = 2 * (tm * tk + tk * tn) * in_it + 2 * tm * tn * out_it
    if needs_scratch:
        b += tm * tn * 4
    return b


def linear_forward(x, w_prepped, b_prepped, N, K, *, force_tiled=False):
    """y = x @ weight.T + bias, using parameters from prepare_linear_params."""
    B, Kx = x.shape
    assert Kx == K
    Kp, Np = w_prepped.shape
    out_dtype = x.dtype
    in_it = jnp.dtype(x.dtype).itemsize
    out_it = jnp.dtype(out_dtype).itemsize

    # -------- cutover heuristic (lane-padded, includes bias + f32 acc) -------
    Bp8 = _round_up(B, 8)
    single_block_bytes = (
        in_it * (Bp8 * Kp + Kp * Np + Np)          # x, weight, bias
        + out_it * Bp8 * Np                        # output
        + 4 * Bp8 * Np                             # f32 matmul intermediate
    )
    use_tiled = force_tiled or single_block_bytes > (4 << 20)

    if not use_tiled:
        # ---------------- small-shape path: one block, no grid ----------------
        xp = x if (Bp8 == B and Kp == K) else jnp.pad(
            x, ((0, Bp8 - B), (0, Kp - K)))
        out = pl.pallas_call(
            _linear_kernel_single,
            out_shape=jax.ShapeDtypeStruct((Bp8, Np), out_dtype),
            in_specs=[
                pl.BlockSpec(memory_space=pltpu.MemorySpace.VMEM),
                pl.BlockSpec(memory_space=pltpu.MemorySpace.VMEM),
                pl.BlockSpec(memory_space=pltpu.MemorySpace.VMEM),
            ],
            out_specs=pl.BlockSpec(memory_space=pltpu.MemorySpace.VMEM),
        )(xp, w_prepped, b_prepped)
        return out[:B, :N]

    # ---------------- tiled path: (tm, tn, tk), K innermost -------------------
    needs_scratch = out_dtype != jnp.float32

    if B >= 512:
        tm = 512
    elif B >= 256:
        tm = 256
    elif B >= 128:
        tm = 128
    else:
        tm = _round_up(B, 8)
    tn = _largest_tile(Np, 512)
    tk = _largest_tile(Kp, 1024)

    # Shrink (tk first, then tn, then tm) until the double-buffered footprint
    # fits the conservative cross-generation VMEM budget.
    while _tiled_footprint(tm, tn, tk, in_it, out_it, needs_scratch) > _VMEM_TILE_BUDGET and tk > 128:
        tk = _largest_tile(Kp, tk - 128)
    while _tiled_footprint(tm, tn, tk, in_it, out_it, needs_scratch) > _VMEM_TILE_BUDGET and tn > 128:
        tn = _largest_tile(Np, tn - 128)
    while _tiled_footprint(tm, tn, tk, in_it, out_it, needs_scratch) > _VMEM_TILE_BUDGET and tm > 128:
        tm = max(128, tm // 2)

    Bp = _round_up(B, tm)
    # Only x (the small, per-call operand) may need padding; weight/bias were
    # padded once at prep time.
    xp = x if (Bp == B and Kp == K) else jnp.pad(
        x, ((0, Bp - B), (0, Kp - K)))

    grid = (Bp // tm, Np // tn, Kp // tk)

    kernel = _linear_kernel_tiled_acc if needs_scratch else _linear_kernel_tiled_f32
    scratch = [pltpu.VMEM((tm, tn), jnp.float32)] if needs_scratch else []

    out = pl.pallas_call(
        kernel,
        out_shape=jax.ShapeDtypeStruct((Bp, Np), out_dtype),
        grid=grid,
        in_specs=[
            pl.BlockSpec((tm, tk), lambda i, j, k: (i, k)),   # x tile
            pl.BlockSpec((tk, tn), lambda i, j, k: (k, j)),   # weight tile (K, N)
            pl.BlockSpec((1, tn), lambda i, j, k: (0, j)),    # bias tile
        ],
        out_specs=pl.BlockSpec((tm, tn), lambda i, j, k: (i, j)),
        scratch_shapes=scratch,
        compiler_params=pltpu.CompilerParams(
            dimension_semantics=("parallel", "parallel", "arbitrary")),
        cost_estimate=pl.CostEstimate(
            flops=2 * B * N * K,
            transcendentals=0,
            bytes_accessed=(x.size * in_it + w_prepped.size * in_it
                            + b_prepped.size * in_it + B * N * out_it)),
    )(xp, w_prepped, b_prepped)
    return out[:B, :N]


if __name__ == "__main__":
    # MyModel(input_size=32, output_size=16), batch of 8 samples.
    batch, input_size, output_size = 8, 32, 16

    key = jax.random.PRNGKey(0)
    kx, kw, kb = jax.random.split(key, 3)

    x = jax.random.normal(kx, (batch, input_size), dtype=jnp.float32)
    # Deterministic parameter init (mimics nn.Linear's uniform(-1/sqrt(K), 1/sqrt(K)))
    bound = 1.0 / (input_size ** 0.5)
    weight = jax.random.uniform(kw, (output_size, input_size),
                                minval=-bound, maxval=bound, dtype=jnp.float32)
    bias = jax.random.uniform(kb, (output_size,),
                              minval=-bound, maxval=bound, dtype=jnp.float32)

    w_p, b_p, N, K = prepare_linear_params(weight, bias)
    y = linear_forward(x, w_p, b_p, N, K)
    jax.block_until_ready(y)

    y_ref = x @ weight.T + bias
    assert y.shape == (batch, output_size)
    assert jnp.allclose(y, y_ref, atol=1e-5, rtol=1e-5)

    # Also exercise the scaled-up tiled path (multi-tile grid, K accumulation).
    B2, K2, N2 = 512, 1536, 768
    kx2, kw2, kb2 = jax.random.split(jax.random.PRNGKey(1), 3)
    x2 = jax.random.normal(kx2, (B2, K2), dtype=jnp.float32)
    w2 = jax.random.normal(kw2, (N2, K2), dtype=jnp.float32) * 0.05
    b2 = jax.random.normal(kb2, (N2,), dtype=jnp.float32)

    w2_p, b2_p, N2_, K2_ = prepare_linear_params(w2, b2)
    y2 = linear_forward(x2, w2_p, b2_p, N2_, K2_, force_tiled=True)
    jax.block_until_ready(y2)
    y2_ref = jnp.dot(x2, w2.T, precision=jax.lax.Precision.HIGHEST) + b2
    assert y2.shape == (B2, N2)
    assert jnp.allclose(y2, y2_ref, atol=5e-2, rtol=5e-2)

    print("KERNEL_OK")
</pallas_src>

<mosaic_0001>
module attributes {stable_mosaic.version = 11 : i64} {
  func.func @_linear_kernel_single(%arg0: memref<8x128xf32, #tpu.memory_space<vmem>>, %arg1: memref<128x128xf32, #tpu.memory_space<vmem>>, %arg2: memref<1x128xf32, #tpu.memory_space<vmem>>, %arg3: memref<8x128xf32, #tpu.memory_space<vmem>>) attributes {dimension_semantics = [], scalar_prefetch = 0 : i64, scratch_operands = 0 : i64, tpu.core_type = #tpu.core_type<tc>} {
    %c0 = arith.constant 0 : index
    %c0_0 = arith.constant 0 : index
    %0 = vector.load %arg0[%c0, %c0_0] : memref<8x128xf32, #tpu.memory_space<vmem>>, vector<8x128xf32>
    %c0_1 = arith.constant 0 : index
    %c0_2 = arith.constant 0 : index
    %1 = vector.load %arg1[%c0_1, %c0_2] : memref<128x128xf32, #tpu.memory_space<vmem>>, vector<128x128xf32>
    %cst = arith.constant dense<0.000000e+00> : vector<8x128xf32>
    %2 = tpu.matmul %0, %1, %cst {dimension_numbers = #tpu.dot_dimension_numbers<[1], [0], [0], [1], [0, 0, 1, 1], [], []>} : vector<8x128xf32>, vector<128x128xf32>, vector<8x128xf32> -> vector<8x128xf32>
    %c0_3 = arith.constant 0 : index
    %c0_4 = arith.constant 0 : index
    %3 = vector.load %arg2[%c0_3, %c0_4] : memref<1x128xf32, #tpu.memory_space<vmem>>, vector<1x128xf32>
    %4 = vector.broadcast %3 : vector<1x128xf32> to vector<8x128xf32>
    %5 = arith.addf %2, %4 : vector<8x128xf32>
    %c0_5 = arith.constant 0 : index
    %c0_6 = arith.constant 0 : index
    %6 = vector.load %arg3[%c0_5, %c0_6] : memref<8x128xf32, #tpu.memory_space<vmem>>, vector<8x128xf32>
    tpu.vector_store %arg3[%c0_5, %c0_6], %5 {strides = array<i32>} : memref<8x128xf32, #tpu.memory_space<vmem>>, vector<8x128xf32>,
    return
  }
}

</mosaic_0001>

<llo_original>
// kernel: tpu_custom_call.1
$region0: #{tpu_custom_call.1}
  #allocation0 [shape = 'u32[]', space=smem, size = 0x4, offset = 0x4, fixed_abs, tag = 'smem constant byte address 0x4 - core index']
  #allocation1 [shape = 'u32[144,128]{1,0:T(1,128)}', space=vmem, size = 0x12000, scoped, tag = 'internal scratch']
  %s0 = inlined_call_operand.hbm [shape: f32[8,128], index: 0, kind: input, shape index: {}]
  %s1 = inlined_call_operand.hbm [shape: f32[128,128], index: 1, kind: input, shape index: {}]
  %s2 = inlined_call_operand.vmem [shape: f32[1,128], index: 2, kind: input, shape index: {}]
  %s3 = inlined_call_operand.hbm [shape: f32[8,128], index: 3, kind: output, shape index: {}]
  %s4 = sld [smem:[#allocation0]]
  $region30: #{tpu_custom_call.1} parent=0
    _
  %s6 = ssub.s32 1, %s4
  %s7 = scalar_select 0, %s6, %s4
  $region1: #{tpu_custom_call.1} parent=0
    #allocation2 [shape = 'u8[4096]{0}', space=vmem, size = 0x1000, scoped, tag = 'input window, operand 0, single buffered']
    #allocation3 [shape = 's32[1]{0}', space=sflag, size = 0x4, scoped, tag = 'scoped memory for tpu_custom_call.1']
    #allocation4 [shape = 's32[1]{0}', space=sflag, size = 0x4, scoped, tag = 'scoped memory for tpu_custom_call.1']
    #allocation5 [shape = 'u8[65536]{0}', space=vmem, size = 0x10000, scoped, tag = 'input window, operand 1, single buffered']
    #allocation6 [shape = 's32[1]{0}', space=sflag, size = 0x4, scoped, tag = 'scoped memory for tpu_custom_call.1']
    #allocation7 [shape = 'u8[4096]{0}', space=vmem, size = 0x1000, scoped, tag = 'output window, operand 0, single buffered']
    %8 = vsyncpa [#allocation3], 0
    %9 = vsyncpa [#allocation6], 0
    %10 = vsyncpa [#allocation4], 0
    // Predicated region
    $region2: #{tpu_custom_call.1} parent=1 // pred_check
      _
    $region3: #{tpu_custom_call.1} parent=1 // pred_check_branch
      %12 = sbr.rel (0) target = $region5
    $region4: #{tpu_custom_call.1} parent=1 // pred_region
      %s14 = ssub.s32 128, 128
      %15 = vsyncadd [#allocation3], %s14
      %s17 = sshll.u32 [#allocation2], 4
      %s18 = int_to_ptr.vmem [resolvable:$true] %s17
      %20 = dma.hbm_to_vmem [thread:$0]  %s0, 128, %s18, [#allocation3]
    $region5: #{tpu_custom_call.1} parent=1 // pred_fallthru
      _
    // Predicated region
    $region6: #{tpu_custom_call.1} parent=1 // pred_check
      _
    $region7: #{tpu_custom_call.1} parent=1 // pred_check_branch
      %22 = sbr.rel (0) target = $region9
    $region8: #{tpu_custom_call.1} parent=1 // pred_region
      %s24 = ssub.s32 2048, 2048
      %25 = vsyncadd [#allocation6], %s24
      %s26 = sshll.u32 [#allocation5], 4
      %s27 = int_to_ptr.vmem [resolvable:$true] %s26
      %32 = dma.hbm_to_vmem [thread:$0]  %s1, 2048, %s27, [#allocation6], 128, 128, 8
    $region9: #{tpu_custom_call.1} parent=1 // pred_fallthru
      _
    // Predicated region
    $region10: #{tpu_custom_call.1} parent=1 // pred_check
      _
    $region11: #{tpu_custom_call.1} parent=1 // pred_check_branch
      %34 = sbr.rel (0) target = $region13
    $region12: #{tpu_custom_call.1} parent=1 // pred_region
      _
    $region13: #{tpu_custom_call.1} parent=1 // pred_fallthru
      _
    // Predicated region
    $region14: #{tpu_custom_call.1} parent=1 // pred_check
      _
    $region15: #{tpu_custom_call.1} parent=1 // pred_check_branch
      %36 = sbr.rel (0) target = $region17
    $region16: #{tpu_custom_call.1} parent=1 // pred_region
      %37 = dma.done [#allocation3], 128
    $region17: #{tpu_custom_call.1} parent=1 // pred_fallthru
      _
    // Predicated region
    $region18: #{tpu_custom_call.1} parent=1 // pred_check
      _
    $region19: #{tpu_custom_call.1} parent=1 // pred_check_branch
      %39 = sbr.rel (0) target = $region21
    $region20: #{tpu_custom_call.1} parent=1 // pred_region
      %40 = dma.done [#allocation6], 2048
    $region21: #{tpu_custom_call.1} parent=1 // pred_fallthru
      _
    %v41 = vld [vmem:[#allocation2] sm:$0xff]
    %v42 = vld [vmem:[#allocation5] sm:$0xff]
    %v43 = vld [vmem:[#allocation5 + $0x8] sm:$0xff]
    %v44 = vld [vmem:[#allocation5 + $0x10] sm:$0xff]
    %v45 = vld [vmem:[#allocation5 + $0x18] sm:$0xff]
    %v46 = vld [vmem:[#allocation5 + $0x20] sm:$0xff]
    %v47 = vld [vmem:[#allocation5 + $0x28] sm:$0xff]
    %v48 = vld [vmem:[#allocation5 + $0x30] sm:$0xff]
    %v49 = vld [vmem:[#allocation5 + $0x38] sm:$0xff]
    %v50 = vld [vmem:[#allocation5 + $0x40] sm:$0xff]
    %v51 = vld [vmem:[#allocation5 + $0x48] sm:$0xff]
    %v52 = vld [vmem:[#allocation5 + $0x50] sm:$0xff]
    %v53 = vld [vmem:[#allocation5 + $0x58] sm:$0xff]
    %v54 = vld [vmem:[#allocation5 + $0x60] sm:$0xff]
    %v55 = vld [vmem:[#allocation5 + $0x68] sm:$0xff]
    %v56 = vld [vmem:[#allocation5 + $0x70] sm:$0xff]
    %v57 = vld [vmem:[#allocation5 + $0x78] sm:$0xff]
    %v58 = vld [vmem:[%s2] sm:$0x1]
    %v60 = vlaneseq
    %v61 = vshrl.u32 %v60, 7
    %v62 = vsub.s32 0, %v61
    %v63 = vrot.slane %v58, %v62
    %65 = vmatprep.subr.mxu0 0.0
    %66 = vmatpush1.msra.mxu0 %v42
    %67 = vmatprep.subr.mxu0 0.0
    %68 = vmatpush1.msra.mxu0 %v43
    %69 = vmatprep.subr.mxu0 0.0
    %70 = vmatpush1.msra.mxu0 %v44
    %71 = vmatprep.subr.mxu0 0.0
    %72 = vmatpush1.msra.mxu0 %v45
    %73 = vmatprep.subr.mxu0 0.0
    %74 = vmatpush1.msra.mxu0 %v46
    %75 = vmatprep.subr.mxu0 0.0
    %76 = vmatpush1.msra.mxu0 %v47
    %77 = vmatprep.subr.mxu0 0.0
    %78 = vmatpush1.msra.mxu0 %v48
    %79 = vmatprep.subr.mxu0 0.0
    %80 = vmatpush1.msra.mxu0 %v49
    %81 = vmatprep.subr.mxu0 0.0
    %82 = vmatpush1.msra.mxu0 %v50
    %83 = vmatprep.subr.mxu0 0.0
    %84 = vmatpush1.msra.mxu0 %v51
    %85 = vmatprep.subr.mxu0 0.0
    %86 = vmatpush1.msra.mxu0 %v52
    %87 = vmatprep.subr.mxu0 0.0
    %88 = vmatpush1.msra.mxu0 %v53
    %89 = vmatprep.subr.mxu0 0.0
    %90 = vmatpush1.msra.mxu0 %v54
    %91 = vmatprep.subr.mxu0 0.0
    %92 = vmatpush1.msra.mxu0 %v55
    %93 = vmatprep.subr.mxu0 0.0
    %94 = vmatpush1.msra.mxu0 %v56
    %95 = vmatprep.subr.mxu0 0.0
    %96 = vmatpush1.msra.mxu0 %v57
    %97 = vmatprep.subr.mxu0 0.0
    %98 = vmatpush1.msra.mxu0 0.0
    %99 = vmatprep.subr.mxu0 0.0
    %100 = vmatpush1.msra.mxu0 0.0
    %101 = vmatprep.subr.mxu0 0.0
    %102 = vmatpush1.msra.mxu0 0.0
    %103 = vmatprep.subr.mxu0 0.0
    %104 = vmatpush1.msra.mxu0 0.0
    %105 = vmatprep.subr.mxu0 0.0
    %106 = vmatpush1.msra.mxu0 0.0
    %107 = vmatprep.subr.mxu0 0.0
    %108 = vmatpush1.msra.mxu0 0.0
    %109 = vmatprep.subr.mxu0 0.0
    %110 = vmatpush1.msra.mxu0 0.0
    %111 = vmatprep.subr.mxu0 0.0
    %112 = vmatpush1.msra.mxu0 0.0
    %113 = vmatprep.subr.mxu0 0.0
    %114 = vmatpush1.msra.mxu0 0.0
    %115 = vmatprep.subr.mxu0 0.0
    %116 = vmatpush1.msra.mxu0 0.0
    %117 = vmatprep.subr.mxu0 0.0
    %118 = vmatpush1.msra.mxu0 0.0
    %119 = vmatprep.subr.mxu0 0.0
    %120 = vmatpush1.msra.mxu0 0.0
    %121 = vmatprep.subr.mxu0 0.0
    %122 = vmatpush1.msra.mxu0 0.0
    %123 = vmatprep.subr.mxu0 0.0
    %124 = vmatpush1.msra.mxu0 0.0
    %125 = vmatprep.subr.mxu0 0.0
    %126 = vmatpush1.msra.mxu0 0.0
    %127 = vmatprep.subr.mxu0 0.0
    %128 = vmatpush1.msra.mxu0 0.0
    %129 = vmatprep.mubr.f32.mxu0 0.0
    %130 = vmatmul.mubr.f32.gmra.mrb[0].mxu0 %v41
    %v131 = vpop.f32.mrb[0].mxu0
    %v132 = vadd.f32 %v63, %v131
    %v133 = vpop.f32.mrb[0].mxu0
    %134 = vdwg.mxu0
    %135 = vst [vmem:[#allocation7] sm:$0xff] %v132
    // Predicated region
    $region22: #{tpu_custom_call.1} parent=1 // pred_check
      _
    $region23: #{tpu_custom_call.1} parent=1 // pred_check_branch
      %137 = sbr.rel (0) target = $region25
    $region24: #{tpu_custom_call.1} parent=1 // pred_region
      %s139 = ssub.s32 128, 128
      %140 = vsyncadd [#allocation4], %s139
      %s142 = sshll.u32 [#allocation7], 4
      %s143 = int_to_ptr.vmem [resolvable:$true] %s142
      %145 = dma.vmem_to_hbm [thread:$0]  %s143, 128, %s3, [#allocation4]
    $region25: #{tpu_custom_call.1} parent=1 // pred_fallthru
      _
    // Predicated region
    $region26: #{tpu_custom_call.1} parent=1 // pred_check
      _
    $region27: #{tpu_custom_call.1} parent=1 // pred_check_branch
      %147 = sbr.rel (0) target = $region29
    $region28: #{tpu_custom_call.1} parent=1 // pred_region
      %148 = dma.done [#allocation4], 128
    $region29: #{tpu_custom_call.1} parent=1 // pred_fallthru
      _
    %149 = vsyncpa [#allocation3], 1
    %150 = vsyncpa [#allocation6], 1
    %151 = vsyncpa [#allocation4], 1

</llo_original>
